<compile_context>
chip_gen: v6e
topology: v6e:2x2x1
jax: 0.10.0
libtpu: 0.0.40
codegen_flags: <defaults>
</compile_context>

<pallas_src>
import jax
import jax.numpy as jnp
from jax.experimental import pallas as pl
from jax.experimental.pallas import tpu as pltpu


def _round_up(n, m):
    return (n + m - 1) // m * m


def lcm_fused_kernel(x_ref, w_ref, b_ref, o_ref):
    # out = x @ W + b on the MXU, f32 accumulation, bias kept in f32.
    o_ref[...] = (
        jnp.dot(x_ref[...], w_ref[...], preferred_element_type=jnp.float32)
        + b_ref[...]
    ).astype(o_ref.dtype)


def fuse_params(w1, b1, w2, b2, compute_dtype=None):
    """Fuse the two bias-only linear layers: y = x @ (W1@W2) + (b1@W2 + b2).

    Exact up to fp rounding.  Call once (hoisted) when weights are static.
    The fused weight may be down-cast to `compute_dtype` (e.g. bf16); the
    fused bias is kept in f32 (negligible traffic, better accuracy).
    """
    w = jnp.dot(w1, w2, preferred_element_type=jnp.float32)          # (F, L)
    b = jnp.dot(b1, w2, preferred_element_type=jnp.float32) + b2     # (1, L)
    if compute_dtype is not None:
        w = w.astype(compute_dtype)
    return w, b.astype(jnp.float32)


def lcm_forward_fused(x, w, b, *, block_m=1024, out_dtype=None):
    """x: (B, F), w: (F, L), b: (1, L)  ->  (B, L)."""
    B, F = x.shape
    Fw, L = w.shape
    assert Fw == F, (Fw, F)
    if out_dtype is None:
        out_dtype = x.dtype

    # Sublane-aligned batch tile.  Prefer >= 2 grid steps so the "parallel"
    # batch axis can shard across both TensorCores on v7x, but never exceed
    # the (sublane-rounded) batch itself.
    block_m = max(8, _round_up(block_m, 8))
    tm = min(block_m, _round_up(pl.cdiv(B, 2), 8), _round_up(B, 8))
    grid = (pl.cdiv(B, tm),)  # partial last block is masked by Pallas

    return pl.pallas_call(
        lcm_fused_kernel,
        out_shape=jax.ShapeDtypeStruct((B, L), out_dtype),
        grid_spec=pltpu.PrefetchScalarGridSpec(
            num_scalar_prefetch=0,
            grid=grid,
            in_specs=[
                # Batch-tiled activations; last dim == full F (legal even if <128).
                pl.BlockSpec((tm, F), lambda i: (i, 0)),
                # Fused weight / bias: constant index_map -> fetched once,
                # resident across the whole grid.  (pipeline_mode=pl.Buffered(1)
                # would halve their VMEM reservation; irrelevant at this size.)
                pl.BlockSpec((F, L), lambda i: (0, 0)),
                pl.BlockSpec((1, L), lambda i: (0, 0)),
            ],
            # True-L output block (== full array extent): masked stores, but
            # 16x less writeback than lane-padding L=8 to 128, and no slice.
            out_specs=pl.BlockSpec((tm, L), lambda i: (i, 0)),
        ),
        compiler_params=pltpu.CompilerParams(
            dimension_semantics=("parallel",)),
    )(x, w, b)


def lcm_forward(x, w1, b1, w2, b2, *, block_m=1024, compute_dtype=None):
    """Forward pass of LCM.

    x : (B, F);  w1: (F, 2F), b1: (1, 2F);  w2: (2F, L), b2: (1, L)
    compute_dtype: e.g. jnp.bfloat16 to halve x/W HBM read traffic
                   (f32 accumulation in-kernel); None keeps x.dtype.
    Returns (B, L) in x.dtype.
    """
    out_dtype = x.dtype
    w, b = fuse_params(w1, b1, w2, b2,
                       compute_dtype=compute_dtype if compute_dtype else x.dtype)
    xc = x.astype(compute_dtype) if compute_dtype is not None else x
    return lcm_forward_fused(xc, w, b, block_m=block_m, out_dtype=out_dtype)


def init_params(key, n_feature, n_label, dtype=jnp.float32):
    """Deterministic init mimicking nn.Linear's uniform(-1/sqrt(fan_in), ...)."""
    k1, k2, k3, k4 = jax.random.split(key, 4)
    hid = n_feature * 2
    bound1 = 1.0 / jnp.sqrt(n_feature)
    bound2 = 1.0 / jnp.sqrt(hid)
    # stored as (in, out) — transposed relative to PyTorch's (out, in)
    w1 = jax.random.uniform(k1, (n_feature, hid), dtype, -bound1, bound1)
    b1 = jax.random.uniform(k2, (1, hid), dtype, -bound1, bound1)
    w2 = jax.random.uniform(k3, (hid, n_label), dtype, -bound2, bound2)
    b2 = jax.random.uniform(k4, (1, n_label), dtype, -bound2, bound2)
    return w1, b1, w2, b2


if __name__ == "__main__":
    key = jax.random.PRNGKey(0)
    n_feature, n_label = 32, 8
    kx, kp, kx2 = jax.random.split(key, 3)
    w1, b1, w2, b2 = init_params(kp, n_feature, n_label)

    # --- small case: single grid step, true-L output ---
    batch = 8
    x = jax.random.normal(kx, (batch, n_feature), jnp.float32)
    out = jax.block_until_ready(lcm_forward(x, w1, b1, w2, b2))
    ref = (x @ w1 + b1) @ w2 + b2
    assert out.shape == (batch, n_label)
    assert jnp.allclose(out, ref, atol=1e-4, rtol=1e-4)

    # --- ragged batch: grid > 1, partial (masked) last block, no pad/slice ---
    batch2 = 300
    x2 = jax.random.normal(kx2, (batch2, n_feature), jnp.float32)
    out2 = jax.block_until_ready(lcm_forward(x2, w1, b1, w2, b2, block_m=128))
    ref2 = (x2 @ w1 + b1) @ w2 + b2
    assert out2.shape == (batch2, n_label)
    assert jnp.allclose(out2, ref2, atol=1e-4, rtol=1e-4)

    # --- bf16 compute path (halved read traffic, f32 accumulation) ---
    out3 = jax.block_until_ready(
        lcm_forward(x2, w1, b1, w2, b2, compute_dtype=jnp.bfloat16))
    assert out3.shape == (batch2, n_label)
    assert out3.dtype == jnp.float32
    assert jnp.allclose(out3, ref2, atol=5e-2, rtol=5e-2)

    print("KERNEL_OK")
</pallas_src>

<mosaic_0001>
module attributes {stable_mosaic.version = 11 : i64} {
  func.func @lcm_fused_kernel(%arg0: i32, %arg1: memref<8x32xf32, #tpu.memory_space<vmem>>, %arg2: memref<32x8xf32, #tpu.memory_space<vmem>>, %arg3: memref<1x8xf32, #tpu.memory_space<vmem>>, %arg4: memref<8x8xf32, #tpu.memory_space<vmem>>) attributes {dimension_semantics = [#tpu.dimension_semantics<parallel>], iteration_bounds = array<i64: 1>, scalar_prefetch = 0 : i64, scratch_operands = 0 : i64, tpu.core_type = #tpu.core_type<tc>, window_params = [{transform_indices = @transform_0, window_bounds = array<i64: 8, 32>}, {pipeline_mode = #tpu.pipeline_mode<synchronous>, transform_indices = @transform_1, window_bounds = array<i64: 32, 8>}, {pipeline_mode = #tpu.pipeline_mode<synchronous>, transform_indices = @transform_2, window_bounds = array<i64: 1, 8>}, {transform_indices = @transform_3, window_bounds = array<i64: 8, 8>}]} {
    %c0 = arith.constant 0 : index
    %c0_0 = arith.constant 0 : index
    %0 = vector.load %arg1[%c0, %c0_0] : memref<8x32xf32, #tpu.memory_space<vmem>>, vector<8x32xf32>
    %c0_1 = arith.constant 0 : index
    %c0_2 = arith.constant 0 : index
    %1 = vector.load %arg2[%c0_1, %c0_2] : memref<32x8xf32, #tpu.memory_space<vmem>>, vector<32x8xf32>
    %cst = arith.constant dense<0.000000e+00> : vector<8x8xf32>
    %2 = tpu.matmul %0, %1, %cst {dimension_numbers = #tpu.dot_dimension_numbers<[1], [0], [0], [1], [0, 0, 1, 1], [], []>} : vector<8x32xf32>, vector<32x8xf32>, vector<8x8xf32> -> vector<8x8xf32>
    %c0_3 = arith.constant 0 : index
    %c0_4 = arith.constant 0 : index
    %3 = vector.load %arg3[%c0_3, %c0_4] : memref<1x8xf32, #tpu.memory_space<vmem>>, vector<1x8xf32>
    %4 = vector.broadcast %3 : vector<1x8xf32> to vector<8x8xf32>
    %5 = arith.addf %2, %4 : vector<8x8xf32>
    %c0_5 = arith.constant 0 : index
    %c0_6 = arith.constant 0 : index
    %6 = vector.load %arg4[%c0_5, %c0_6] : memref<8x8xf32, #tpu.memory_space<vmem>>, vector<8x8xf32>
    tpu.vector_store %arg4[%c0_5, %c0_6], %5 {strides = array<i32>} : memref<8x8xf32, #tpu.memory_space<vmem>>, vector<8x8xf32>,
    return
  }
  func.func @transform_0(%arg0: i32) -> (i32, i32) {
    %c0_i32 = arith.constant 0 : i32
    %c0_i32_0 = arith.constant 0 : i32
    return %arg0, %c0_i32 : i32, i32
  }
  func.func @transform_1(%arg0: i32) -> (i32, i32) {
    %c0_i32 = arith.constant 0 : i32
    %c0_i32_0 = arith.constant 0 : i32
    %c0_i32_1 = arith.constant 0 : i32
    return %c0_i32, %c0_i32_0 : i32, i32
  }
  func.func @transform_2(%arg0: i32) -> (i32, i32) {
    %c0_i32 = arith.constant 0 : i32
    %c0_i32_0 = arith.constant 0 : i32
    %c0_i32_1 = arith.constant 0 : i32
    return %c0_i32, %c0_i32_0 : i32, i32
  }
  func.func @transform_3(%arg0: i32) -> (i32, i32) {
    %c0_i32 = arith.constant 0 : i32
    %c0_i32_0 = arith.constant 0 : i32
    return %arg0, %c0_i32 : i32, i32
  }
}

</mosaic_0001>

<llo_original>
// kernel: tpu_custom_call.1
$region0: #{tpu_custom_call.1}
  #allocation0 [shape = 'u32[]', space=smem, size = 0x4, offset = 0x4, fixed_abs, tag = 'smem constant byte address 0x4 - core index']
  #allocation1 [shape = 'u32[144,128]{1,0:T(1,128)}', space=vmem, size = 0x12000, scoped, tag = 'internal scratch']
  %s0 = inlined_call_operand.vmem [shape: f32[8,32], index: 0, kind: input, shape index: {}]
  %s1 = inlined_call_operand.vmem [shape: f32[32,8], index: 1, kind: input, shape index: {}]
  %s2 = inlined_call_operand.vmem [shape: f32[1,8], index: 2, kind: input, shape index: {}]
  %s3 = inlined_call_operand.hbm [shape: f32[8,8], index: 3, kind: output, shape index: {}]
  %s4 = sld [smem:[#allocation0]]
  $region22: #{tpu_custom_call.1} parent=0
    _
  %s6 = ssub.s32 1, %s4
  %s7 = scalar_select 0, %s6, %s4
  $region1: #{tpu_custom_call.1} parent=0
    #allocation2 [shape = 'u8[4096]{0}', space=vmem, size = 0x1000, scoped, tag = 'output window, operand 0, single buffered']
    #allocation3 [shape = 's32[1]{0}', space=sflag, size = 0x4, scoped, tag = 'scoped memory for tpu_custom_call.1']
    %8 = vsyncpa [#allocation3], 0
    // Predicated region
    $region2: #{tpu_custom_call.1} parent=1 // pred_check
      _
    $region3: #{tpu_custom_call.1} parent=1 // pred_check_branch
      %10 = sbr.rel (0) target = $region5
    $region4: #{tpu_custom_call.1} parent=1 // pred_region
      _
    $region5: #{tpu_custom_call.1} parent=1 // pred_fallthru
      _
    // Predicated region
    $region6: #{tpu_custom_call.1} parent=1 // pred_check
      _
    $region7: #{tpu_custom_call.1} parent=1 // pred_check_branch
      %12 = sbr.rel (0) target = $region9
    $region8: #{tpu_custom_call.1} parent=1 // pred_region
      _
    $region9: #{tpu_custom_call.1} parent=1 // pred_fallthru
      _
    // Predicated region
    $region10: #{tpu_custom_call.1} parent=1 // pred_check
      _
    $region11: #{tpu_custom_call.1} parent=1 // pred_check_branch
      %14 = sbr.rel (0) target = $region13
    $region12: #{tpu_custom_call.1} parent=1 // pred_region
      _
    $region13: #{tpu_custom_call.1} parent=1 // pred_fallthru
      _
    %v15 = vld [vmem:[%s0] sm:$0xff]
    %v16 = vld [vmem:[%s1] sm:$0xff]
    %v17 = vld [vmem:[%s1 + $0x8] sm:$0xff]
    %v18 = vld [vmem:[%s1 + $0x10] sm:$0xff]
    %v19 = vld [vmem:[%s1 + $0x18] sm:$0xff]
    %v20 = vld [vmem:[%s2] sm:$0x1]
    %v22 = vlaneseq
    %v23 = vshrl.u32 %v22, 7
    %v24 = vsub.s32 0, %v23
    %v25 = vrot.slane %v20, %v24
    %vm27 = vcmask 261120
    %v29 = vsel %vm27, %v15, 0
    %31 = vmatprep.subr.mxu0 0.0
    %32 = vmatpush1.msra.mxu0 0.0
    %33 = vmatprep.subr.mxu0 0.0
    %34 = vmatpush1.msra.mxu0 0.0
    %35 = vmatprep.subr.mxu0 0.0
    %36 = vmatpush1.msra.mxu0 0.0
    %37 = vmatprep.subr.mxu0 0.0
    %38 = vmatpush1.msra.mxu0 0.0
    %39 = vmatprep.subr.mxu0 0.0
    %40 = vmatpush1.msra.mxu0 0.0
    %41 = vmatprep.subr.mxu0 0.0
    %42 = vmatpush1.msra.mxu0 0.0
    %43 = vmatprep.subr.mxu0 0.0
    %44 = vmatpush1.msra.mxu0 0.0
    %45 = vmatprep.subr.mxu0 0.0
    %46 = vmatpush1.msra.mxu0 0.0
    %47 = vmatprep.subr.mxu0 0.0
    %48 = vmatpush1.msra.mxu0 0.0
    %49 = vmatprep.subr.mxu0 0.0
    %50 = vmatpush1.msra.mxu0 0.0
    %51 = vmatprep.subr.mxu0 0.0
    %52 = vmatpush1.msra.mxu0 0.0
    %53 = vmatprep.subr.mxu0 0.0
    %54 = vmatpush1.msra.mxu0 0.0
    %55 = vmatprep.subr.mxu0 0.0
    %56 = vmatpush1.msra.mxu0 %v19
    %57 = vmatprep.subr.mxu0 0.0
    %58 = vmatpush1.msra.mxu0 %v18
    %59 = vmatprep.subr.mxu0 0.0
    %60 = vmatpush1.msra.mxu0 %v17
    %61 = vmatprep.subr.mxu0 0.0
    %62 = vmatpush1.msra.mxu0 %v16
    %63 = vmatprep.subr.mxu0 0.0
    %64 = vmatpush2.msra.mxu0 0.0
    %65 = vmatprep.subr.mxu0 0.0
    %66 = vmatpush2.msra.mxu0 0.0
    %67 = vmatprep.subr.mxu0 0.0
    %68 = vmatpush2.msra.mxu0 0.0
    %69 = vmatprep.subr.mxu0 0.0
    %70 = vmatpush2.msra.mxu0 0.0
    %71 = vmatprep.subr.mxu0 0.0
    %72 = vmatpush2.msra.mxu0 0.0
    %73 = vmatprep.subr.mxu0 0.0
    %74 = vmatpush2.msra.mxu0 0.0
    %75 = vmatprep.subr.mxu0 0.0
    %76 = vmatpush2.msra.mxu0 0.0
    %77 = vmatprep.subr.mxu0 0.0
    %78 = vmatpush2.msra.mxu0 0.0
    %79 = vmatprep.subr.mxu0 0.0
    %80 = vmatpush2.msra.mxu0 0.0
    %81 = vmatprep.subr.mxu0 0.0
    %82 = vmatpush2.msra.mxu0 0.0
    %83 = vmatprep.subr.mxu0 0.0
    %84 = vmatpush2.msra.mxu0 0.0
    %85 = vmatprep.subr.mxu0 0.0
    %86 = vmatpush2.msra.mxu0 0.0
    %87 = vmatprep.subr.mxu0 0.0
    %88 = vmatpush2.msra.mxu0 0.0
    %89 = vmatprep.subr.mxu0 0.0
    %90 = vmatpush2.msra.mxu0 0.0
    %91 = vmatprep.subr.mxu0 0.0
    %92 = vmatpush2.msra.mxu0 0.0
    %93 = vmatprep.subr.mxu0 0.0
    %94 = vmatpush2.msra.mxu0 0.0
    %95 = vmatprep.mubr.f32.mxu0 0.0
    %96 = vmatmul.mubr.f32.gmra.mxu0 %v29
    %v97 = vpop.f32.mrf.mxu0
    %v98 = vadd.f32 %v25, %v97
    %v99 = vpop.f32.mrf.mxu0
    %100 = vdwg.mxu0
    %vm101 = vcmask 64512
    %102 = vst.msk [vmem:[#allocation2] sm:$0xff] %vm101, %v98
    // Predicated region
    $region14: #{tpu_custom_call.1} parent=1 // pred_check
      _
    $region15: #{tpu_custom_call.1} parent=1 // pred_check_branch
      %104 = sbr.rel (0) target = $region17
    $region16: #{tpu_custom_call.1} parent=1 // pred_region
      %s106 = ssub.s32 128, 128
      %107 = vsyncadd [#allocation3], %s106
      %s109 = sshll.u32 [#allocation2], 4
      %s110 = int_to_ptr.vmem [resolvable:$true] %s109
      %112 = dma.vmem_to_hbm [thread:$0]  %s110, 128, %s3, [#allocation3]
    $region17: #{tpu_custom_call.1} parent=1 // pred_fallthru
      _
    // Predicated region
    $region18: #{tpu_custom_call.1} parent=1 // pred_check
      _
    $region19: #{tpu_custom_call.1} parent=1 // pred_check_branch
      %114 = sbr.rel (0) target = $region21
    $region20: #{tpu_custom_call.1} parent=1 // pred_region
      %115 = dma.done [#allocation3], 128
    $region21: #{tpu_custom_call.1} parent=1 // pred_fallthru
      _
    %116 = vsyncpa [#allocation3], 1

</llo_original>
